<compile_context>
chip_gen: v7x
topology: tpu7x:2x2x1
jax: 0.10.0
libtpu: 0.0.40
codegen_flags: <defaults>
</compile_context>

<pallas_src>
import functools

import jax
import jax.numpy as jnp
from jax.experimental import pallas as pl
from jax.experimental.pallas import tpu as pltpu


# ----------------------------- Pallas kernel --------------------------------


def _patch_embed_kernel(p_ref, w_ref, b_ref, g_ref, bb_ref, o_ref, *, true_e, eps):
    """Fused (patch-conv as matmul) + bias + LayerNorm for one (batch, row-tile).

    p_ref:  (1, TN, K)   im2col patches (bf16)
    w_ref:  (K, Ep)      conv weight, reshaped OIHW -> (K, E) and lane-padded (bf16)
    b_ref:  (1, Ep)      conv bias, lane-padded with zeros (f32)
    g_ref:  (1, Ep)      LayerNorm weight (gamma), lane-padded with zeros (f32)
    bb_ref: (1, Ep)      LayerNorm bias (beta), lane-padded with zeros (f32)
    o_ref:  (1, TN, Ep)  output tokens (lane-dense)
    """
    # Single MXU push: im2col patches @ folded conv weight, f32 accumulation.
    acc = jnp.dot(p_ref[0], w_ref[...], preferred_element_type=jnp.float32)
    acc = acc + b_ref[...]  # conv bias; padded lanes stay exactly 0.

    # LayerNorm over the true embed_dim.  Padded lanes of `acc` are exactly zero,
    # so full-lane reductions divided by true_e give the correct statistics.
    # Use the uncentered variance formula so padded lanes do not pollute
    # (x - mean)^2.
    inv_e = 1.0 / float(true_e)
    mean = jnp.sum(acc, axis=-1, keepdims=True) * inv_e
    mean_sq = jnp.sum(acc * acc, axis=-1, keepdims=True) * inv_e
    var = mean_sq - mean * mean
    inv_std = jax.lax.rsqrt(var + eps)  # EUP rsqrt (free slot)

    y = (acc - mean) * inv_std * g_ref[...] + bb_ref[...]
    o_ref[...] = y[None, :, :].astype(o_ref.dtype)


# ------------------------------- Wrapper -------------------------------------


def _round_up(x, m):
    return (x + m - 1) // m * m


def _n_tile(n):
    """Largest tile (<=256, multiple of 8) that divides n; else the full dim."""
    for t in (256, 128, 64, 32, 16, 8):
        if n % t == 0:
            return t
    return n


def extract_patches(x_nchw, patch):
    """(B, C, H, W) -> (B, N, C*P*P) with (c, py, px) order, matching OIHW weights.

    Pure layout glue (a single XLA transpose); a stride==kernel conv has no
    overlapping taps, so this replaces both padding and the 9-tap loop of a
    general conv.
    """
    B, C, H, W = x_nchw.shape
    P = patch
    Hp, Wp = H // P, W // P
    x = x_nchw.reshape(B, C, Hp, P, Wp, P)
    x = jnp.transpose(x, (0, 2, 4, 1, 3, 5))  # (B, Hp, Wp, C, P, P)
    return x.reshape(B, Hp * Wp, C * P * P)


def patch_embed_forward(x_nchw, params, *, matmul_dtype=jnp.bfloat16):
    """Equivalent of PatchEmbed.forward(x) for x in PyTorch NCHW layout.

    Returns (tokens, H // patch, W // patch) with tokens of shape (B, N, embed_dim).
    """
    P = int(params["patch_size"])
    eps = float(params["eps"])
    w = params["proj_w"]  # (E, C, P, P)  PyTorch OIHW
    bias = params["proj_b"]  # (E,)
    gamma = params["ln_w"]  # (E,)
    beta = params["ln_b"]  # (E,)

    B, C, H, W = x_nchw.shape
    E = w.shape[0]
    Hp, Wp = H // P, W // P
    N = Hp * Wp
    K = C * P * P
    Ep = _round_up(E, 128)  # lane-dense output width
    TN = _n_tile(N)

    # im2col patches + weight folding (bf16 operands, f32 affine params).
    patches = extract_patches(x_nchw, P).astype(matmul_dtype)  # (B, N, K)
    w2d = jnp.transpose(w.reshape(E, K)).astype(matmul_dtype)  # (K, E)
    w_pad = jnp.zeros((K, Ep), matmul_dtype).at[:, :E].set(w2d)
    b_pad = jnp.zeros((1, Ep), jnp.float32).at[0, :E].set(bias.astype(jnp.float32))
    g_pad = jnp.zeros((1, Ep), jnp.float32).at[0, :E].set(gamma.astype(jnp.float32))
    bb_pad = jnp.zeros((1, Ep), jnp.float32).at[0, :E].set(beta.astype(jnp.float32))

    kernel = functools.partial(_patch_embed_kernel, true_e=E, eps=eps)

    out = pl.pallas_call(
        kernel,
        out_shape=jax.ShapeDtypeStruct((B, N, Ep), x_nchw.dtype),
        grid_spec=pltpu.PrefetchScalarGridSpec(
            num_scalar_prefetch=0,
            grid=(B, N // TN),
            in_specs=[
                pl.BlockSpec((1, TN, K), lambda b, n: (b, n, 0)),
                pl.BlockSpec((K, Ep), lambda b, n: (0, 0)),
                pl.BlockSpec((1, Ep), lambda b, n: (0, 0)),
                pl.BlockSpec((1, Ep), lambda b, n: (0, 0)),
                pl.BlockSpec((1, Ep), lambda b, n: (0, 0)),
            ],
            out_specs=pl.BlockSpec((1, TN, Ep), lambda b, n: (b, n, 0)),
        ),
        compiler_params=pltpu.CompilerParams(
            dimension_semantics=("parallel", "parallel")),
    )(patches, w_pad, b_pad, g_pad, bb_pad)

    if Ep != E:
        out = out[..., :E]  # drop lane padding (no-op copy only when E % 128 != 0)
    return out, Hp, Wp


# ---------------------------- Pure-JAX reference ------------------------------


def reference_forward(x_nchw, params, *, matmul_dtype=jnp.float32):
    """Straightforward JAX port of PatchEmbed.forward (strided conv + LayerNorm)."""
    P = int(params["patch_size"])
    eps = float(params["eps"])
    w = params["proj_w"]
    bias = params["proj_b"]
    gamma = params["ln_w"]
    beta = params["ln_b"]

    B, C, H, W = x_nchw.shape
    E = w.shape[0]
    Hp, Wp = H // P, W // P

    xq = x_nchw.astype(matmul_dtype).astype(jnp.float32)
    wq = w.astype(matmul_dtype).astype(jnp.float32)
    y = jax.lax.conv_general_dilated(
        xq, wq, window_strides=(P, P), padding="VALID",
        dimension_numbers=("NCHW", "OIHW", "NCHW"))
    y = y + bias[None, :, None, None]
    y = y.reshape(B, E, Hp * Wp).transpose(0, 2, 1)  # flatten(2).transpose(1, 2)
    mean = y.mean(-1, keepdims=True)
    var = y.var(-1, keepdims=True)
    y = (y - mean) / jnp.sqrt(var + eps) * gamma + beta
    return y, Hp, Wp


# --------------------------------- Demo ---------------------------------------


if __name__ == "__main__":
    # Small shapes consistent with the module: B=2, in_chans=4, 16x16 image,
    # patch_size=4, embed_dim=32  ->  N = 16 tokens.
    B, C, H, W = 2, 4, 16, 16
    patch, embed_dim = 4, 32

    key = jax.random.PRNGKey(0)
    kx, kw, kb, kg, kbeta = jax.random.split(key, 5)
    x = jax.random.normal(kx, (B, C, H, W), jnp.float32)  # PyTorch NCHW input

    fan_out = patch * patch * embed_dim  # module's kaiming init for the conv
    params = {
        "patch_size": patch,
        "eps": 1e-5,
        "proj_w": jax.random.normal(kw, (embed_dim, C, patch, patch), jnp.float32)
                  * jnp.sqrt(2.0 / fan_out),
        # Module init gives zero bias / identity LayerNorm; use small random
        # values instead so the bias / gamma / beta paths are actually exercised.
        "proj_b": 0.1 * jax.random.normal(kb, (embed_dim,), jnp.float32),
        "ln_w": 1.0 + 0.1 * jax.random.normal(kg, (embed_dim,), jnp.float32),
        "ln_b": 0.1 * jax.random.normal(kbeta, (embed_dim,), jnp.float32),
    }

    out, Hp, Wp = patch_embed_forward(x, params, matmul_dtype=jnp.bfloat16)
    out = jax.block_until_ready(out)

    assert out.shape == (B, (H // patch) * (W // patch), embed_dim), out.shape
    assert (Hp, Wp) == (H // patch, W // patch), (Hp, Wp)

    # Correctness: tight check vs a bf16-operand reference (same quantization as
    # the kernel), loose check vs the exact f32 module semantics (tolerance
    # covers the deliberate bf16 matmul-operand cast).
    ref_bf16, _, _ = reference_forward(x, params, matmul_dtype=jnp.bfloat16)
    ref_f32, _, _ = reference_forward(x, params, matmul_dtype=jnp.float32)
    err_tight = float(jnp.max(jnp.abs(out - ref_bf16)))
    err_loose = float(jnp.max(jnp.abs(out - ref_f32)))
    assert err_tight < 5e-3, err_tight
    assert err_loose < 0.15, err_loose

    print("KERNEL_OK")
</pallas_src>

<mosaic_0001>
module attributes {stable_mosaic.version = 11 : i64} {
  func.func @_patch_embed_kernel(%arg0: i32, %arg1: i32, %arg2: memref<1x16x64xbf16, #tpu.memory_space<vmem>>, %arg3: memref<64x128xbf16, #tpu.memory_space<vmem>>, %arg4: memref<1x128xf32, #tpu.memory_space<vmem>>, %arg5: memref<1x128xf32, #tpu.memory_space<vmem>>, %arg6: memref<1x128xf32, #tpu.memory_space<vmem>>, %arg7: memref<1x16x128xf32, #tpu.memory_space<vmem>>) attributes {dimension_semantics = [#tpu.dimension_semantics<parallel>, #tpu.dimension_semantics<parallel>], iteration_bounds = array<i64: 2, 1>, scalar_prefetch = 0 : i64, scratch_operands = 0 : i64, tpu.core_type = #tpu.core_type<tc>, window_params = [{transform_indices = @transform_0, window_bounds = array<i64: 1, 16, 64>}, {pipeline_mode = #tpu.pipeline_mode<synchronous>, transform_indices = @transform_1, window_bounds = array<i64: 64, 128>}, {pipeline_mode = #tpu.pipeline_mode<synchronous>, transform_indices = @transform_2, window_bounds = array<i64: 1, 128>}, {pipeline_mode = #tpu.pipeline_mode<synchronous>, transform_indices = @transform_3, window_bounds = array<i64: 1, 128>}, {pipeline_mode = #tpu.pipeline_mode<synchronous>, transform_indices = @transform_4, window_bounds = array<i64: 1, 128>}, {transform_indices = @transform_5, window_bounds = array<i64: 1, 16, 128>}]} {
    %c0 = arith.constant 0 : index
    %c0_0 = arith.constant 0 : index
    %c0_1 = arith.constant 0 : index
    %0 = vector.load %arg2[%c0, %c0_0, %c0_1] : memref<1x16x64xbf16, #tpu.memory_space<vmem>>, vector<1x16x64xbf16>
    %1 = vector.shape_cast %0 : vector<1x16x64xbf16> to vector<16x64xbf16>
    %c0_2 = arith.constant 0 : index
    %c0_3 = arith.constant 0 : index
    %2 = vector.load %arg3[%c0_2, %c0_3] : memref<64x128xbf16, #tpu.memory_space<vmem>>, vector<64x128xbf16>
    %cst = arith.constant dense<0.000000e+00> : vector<16x128xf32>
    %3 = tpu.matmul %1, %2, %cst {dimension_numbers = #tpu.dot_dimension_numbers<[1], [0], [0], [1], [0, 0, 1, 1], [], []>} : vector<16x64xbf16>, vector<64x128xbf16>, vector<16x128xf32> -> vector<16x128xf32>
    %c0_4 = arith.constant 0 : index
    %c0_5 = arith.constant 0 : index
    %4 = vector.load %arg4[%c0_4, %c0_5] : memref<1x128xf32, #tpu.memory_space<vmem>>, vector<1x128xf32>
    %5 = vector.broadcast %4 : vector<1x128xf32> to vector<16x128xf32>
    %6 = arith.addf %3, %5 : vector<16x128xf32>
    %cst_6 = arith.constant dense<0.000000e+00> : vector<16xf32>
    %7 = vector.multi_reduction <add>, %6, %cst_6 [1] : vector<16x128xf32> to vector<16xf32>
    %8 = vector.shape_cast %7 : vector<16xf32> to vector<16x1xf32>
    %cst_7 = arith.constant 3.125000e-02 : f32
    %9 = vector.broadcast %cst_7 : f32 to vector<16x1xf32>
    %10 = arith.mulf %8, %9 : vector<16x1xf32>
    %11 = arith.mulf %6, %6 : vector<16x128xf32>
    %cst_8 = arith.constant dense<0.000000e+00> : vector<16xf32>
    %12 = vector.multi_reduction <add>, %11, %cst_8 [1] : vector<16x128xf32> to vector<16xf32>
    %13 = vector.shape_cast %12 : vector<16xf32> to vector<16x1xf32>
    %cst_9 = arith.constant 3.125000e-02 : f32
    %14 = vector.broadcast %cst_9 : f32 to vector<16x1xf32>
    %15 = arith.mulf %13, %14 : vector<16x1xf32>
    %16 = arith.mulf %10, %10 : vector<16x1xf32>
    %17 = arith.subf %15, %16 : vector<16x1xf32>
    %cst_10 = arith.constant 9.99999974E-6 : f32
    %18 = vector.broadcast %cst_10 : f32 to vector<16x1xf32>
    %19 = arith.addf %17, %18 : vector<16x1xf32>
    %20 = math.rsqrt %19 : vector<16x1xf32>
    %21 = vector.broadcast %10 : vector<16x1xf32> to vector<16x128xf32>
    %22 = arith.subf %6, %21 : vector<16x128xf32>
    %23 = vector.broadcast %20 : vector<16x1xf32> to vector<16x128xf32>
    %24 = arith.mulf %22, %23 : vector<16x128xf32>
    %c0_11 = arith.constant 0 : index
    %c0_12 = arith.constant 0 : index
    %25 = vector.load %arg5[%c0_11, %c0_12] : memref<1x128xf32, #tpu.memory_space<vmem>>, vector<1x128xf32>
    %26 = vector.broadcast %25 : vector<1x128xf32> to vector<16x128xf32>
    %27 = arith.mulf %24, %26 : vector<16x128xf32>
    %c0_13 = arith.constant 0 : index
    %c0_14 = arith.constant 0 : index
    %28 = vector.load %arg6[%c0_13, %c0_14] : memref<1x128xf32, #tpu.memory_space<vmem>>, vector<1x128xf32>
    %29 = vector.broadcast %28 : vector<1x128xf32> to vector<16x128xf32>
    %30 = arith.addf %27, %29 : vector<16x128xf32>
    %31 = vector.shape_cast %30 : vector<16x128xf32> to vector<1x16x128xf32>
    %c0_15 = arith.constant 0 : index
    %c0_16 = arith.constant 0 : index
    %c0_17 = arith.constant 0 : index
    %32 = vector.load %arg7[%c0_15, %c0_16, %c0_17] : memref<1x16x128xf32, #tpu.memory_space<vmem>>, vector<1x16x128xf32>
    tpu.vector_store %arg7[%c0_15, %c0_16, %c0_17], %31 {strides = array<i32>} : memref<1x16x128xf32, #tpu.memory_space<vmem>>, vector<1x16x128xf32>,
    return
  }
  func.func @transform_0(%arg0: i32, %arg1: i32) -> (i32, i32, i32) {
    %c0_i32 = arith.constant 0 : i32
    %c0_i32_0 = arith.constant 0 : i32
    return %arg0, %arg1, %c0_i32 : i32, i32, i32
  }
  func.func @transform_1(%arg0: i32, %arg1: i32) -> (i32, i32) {
    %c0_i32 = arith.constant 0 : i32
    %c0_i32_0 = arith.constant 0 : i32
    %c0_i32_1 = arith.constant 0 : i32
    return %c0_i32, %c0_i32_0 : i32, i32
  }
  func.func @transform_2(%arg0: i32, %arg1: i32) -> (i32, i32) {
    %c0_i32 = arith.constant 0 : i32
    %c0_i32_0 = arith.constant 0 : i32
    %c0_i32_1 = arith.constant 0 : i32
    return %c0_i32, %c0_i32_0 : i32, i32
  }
  func.func @transform_3(%arg0: i32, %arg1: i32) -> (i32, i32) {
    %c0_i32 = arith.constant 0 : i32
    %c0_i32_0 = arith.constant 0 : i32
    %c0_i32_1 = arith.constant 0 : i32
    return %c0_i32, %c0_i32_0 : i32, i32
  }
  func.func @transform_4(%arg0: i32, %arg1: i32) -> (i32, i32) {
    %c0_i32 = arith.constant 0 : i32
    %c0_i32_0 = arith.constant 0 : i32
    %c0_i32_1 = arith.constant 0 : i32
    return %c0_i32, %c0_i32_0 : i32, i32
  }
  func.func @transform_5(%arg0: i32, %arg1: i32) -> (i32, i32, i32) {
    %c0_i32 = arith.constant 0 : i32
    %c0_i32_0 = arith.constant 0 : i32
    return %arg0, %arg1, %c0_i32 : i32, i32, i32
  }
}

</mosaic_0001>

<llo_original>
// kernel: tpu_custom_call.1
$region0: #{tpu_custom_call.1}
  #allocation0 [shape = 'u32[]', space=smem, size = 0x4, offset = 0x4, fixed_abs, tag = 'smem constant byte address 0x4 - core index']
  #allocation1 [shape = 'u32[144,128]{1,0:T(1,128)}', space=vmem, size = 0x12000, scoped, tag = 'internal scratch']
  %s0 = inlined_call_operand.hbm [shape: bf16[2,16,64], index: 0, kind: input, shape index: {}]
  %s1 = inlined_call_operand.hbm [shape: bf16[64,128], index: 1, kind: input, shape index: {}]
  %s2 = inlined_call_operand.vmem [shape: f32[1,128], index: 2, kind: input, shape index: {}]
  %s3 = inlined_call_operand.vmem [shape: f32[1,128], index: 3, kind: input, shape index: {}]
  %s4 = inlined_call_operand.vmem [shape: f32[1,128], index: 4, kind: input, shape index: {}]
  %s5 = inlined_call_operand.hbm [shape: f32[2,16,128], index: 5, kind: output, shape index: {}]
  %s6 = sld [smem:[#allocation0]]
  $region61: #{tpu_custom_call.1} parent=0
    _
  %s8 = ssub.s32 1, %s6
  %s9 = scalar_select 0, %s8, %s6
  $region1: #{tpu_custom_call.1} parent=0
    #allocation2 [shape = 'u8[8192]{0}', space=vmem, size = 0x2000, scoped, tag = 'input window, operand 0']
    #allocation3 [shape = 's32[2]{0}', space=sflag, size = 0x8, scoped, tag = 'scoped memory for tpu_custom_call.1']
    #allocation4 [shape = 's32[2]{0}', space=sflag, size = 0x8, scoped, tag = 'scoped memory for tpu_custom_call.1']
    #allocation5 [shape = 'u8[16384]{0}', space=vmem, size = 0x4000, scoped, tag = 'input window, operand 1, single buffered']
    #allocation6 [shape = 's32[1]{0}', space=sflag, size = 0x4, scoped, tag = 'scoped memory for tpu_custom_call.1']
    #allocation7 [shape = 'u8[16384]{0}', space=vmem, size = 0x4000, scoped, tag = 'output window, operand 0']
    %10 = vsyncpa [#allocation3], 0
    %s11 = scalar_lea.sflag [#allocation3], 1
    %12 = vsyncpa %s11, 0
    %13 = vsyncpa [#allocation6], 0
    %14 = vsyncpa [#allocation4], 0
    %s15 = scalar_lea.sflag [#allocation4], 1
    %16 = vsyncpa %s15, 0
    loop: start=0, step=1, limit=4
    $region2: #{tpu_custom_call.1} parent=1 // loop_pre_header
      _
    $region3: #{tpu_custom_call.1} parent=1 // loop_header
      %s18 = sphi 0, %s22
      %p19 = scmp.ge.s32.totalorder %s18, 4
      %s25 = sphi 0, %s37
      %s26 = sphi 0, %s33
      %s27 = sphi 0, %s25
      %s28 = sphi 0, %s26
      %s29 = sphi 0, %s27
      %s30 = sphi 0, %s28
      %s42 = sphi 0, %s44
      %s45 = sphi 0, %s42
      %s46 = sphi 0, %s45
      %s62 = sphi 0, %s46
      %s66 = sphi 0, %s66
      %s68 = sphi 0, %s66
      %s69 = sphi 0, %s68
      %s83 = sphi 0, %s69
      %s87 = sphi 0, %s87
      %s89 = sphi 0, %s87
      %s90 = sphi 0, %s89
      %s104 = sphi 0, %s90
      %s108 = sphi 0, %s108
      %s110 = sphi 0, %s108
      %s111 = sphi 0, %s110
      %s125 = sphi 0, %s111
      %s129 = sphi 0, %s129
      %s131 = sphi 0, %s129
      %s132 = sphi 0, %s131
      %s146 = sphi 0, %s132
      %s154 = sphi 0, %s156
      %s157 = sphi 0, %s154
      %s158 = sphi 0, %s157
      %s174 = sphi 0, %s158
    $region4: #{tpu_custom_call.1} parent=1 // loop_header_branch
      %21 = sbr.rel (%p19) target = $region8
    $region5: #{tpu_custom_call.1} parent=1 // loop_body
      %s23 = ssub.s32 %s18, 1
      %s24 = ssub.s32 %s18, 2
      %s31 = sadd.s32 1, %s26
      %p32 = scmp.ge.s32.totalorder %s31, 1
      %s33 = scalar_select %p32, 0, %s31
      %s34 = sadd.s32 1, %s25
      %s35 = scalar_select %p32, %s34, %s25
      %p36 = scmp.ge.s32.totalorder %s35, 2
      %s37 = scalar_select %p36, 0, %s35
      %s38 = ssub.s32 %s25, %s37
      %s39 = ssub.s32 %s26, %s33
      %s40 = sor.u32 %s38, %s39
      %p41 = scmp.eq.s32.totalorder %s40, 0
      %s43 = sadd.s32 %s42, 1
      %s44 = scalar_select %p41, %s42, %s43
      %p47 = pneg %p41
      %p48 = scmp.eq.s32.totalorder %s18, 1
      %p49 = por %p47, %p48
      %p50 = scmp.ne.s32.totalorder %s42, %s45
      %p51 = scmp.eq.s32.totalorder %s18, 0
      %p52 = por %p50, %p51
      %p53 = scmp.ne.s32.totalorder %s42, %s45
      %p54 = scmp.eq.s32.totalorder %s23, 1
      %p55 = por %p53, %p54
      %p56 = scmp.ne.s32.totalorder %s45, %s46
      %p57 = scmp.eq.s32.totalorder %s23, 0
      %p58 = por %p56, %p57
      %p59 = scmp.ne.s32.totalorder %s45, %s46
      %p60 = scmp.eq.s32.totalorder %s24, 1
      %p61 = por %p59, %p60
      %p63 = scmp.ne.s32.totalorder %s46, %s62
      %p64 = scmp.eq.s32.totalorder %s24, 0
      %p65 = por %p63, %p64
      %s67 = sadd.s32 %s66, 1
      %p70 = scmp.eq.s32.totalorder %s18, 1
      %p71 = scmp.ne.s32.totalorder %s66, %s68
      %p72 = scmp.eq.s32.totalorder %s18, 0
      %p73 = por %p71, %p72
      %p74 = scmp.ne.s32.totalorder %s66, %s68
      %p75 = scmp.eq.s32.totalorder %s23, 1
      %p76 = por %p74, %p75
      %p77 = scmp.ne.s32.totalorder %s68, %s69
      %p78 = scmp.eq.s32.totalorder %s23, 0
      %p79 = por %p77, %p78
      %p80 = scmp.ne.s32.totalorder %s68, %s69
      %p81 = scmp.eq.s32.totalorder %s24, 1
      %p82 = por %p80, %p81
      %p84 = scmp.ne.s32.totalorder %s69, %s83
      %p85 = scmp.eq.s32.totalorder %s24, 0
      %p86 = por %p84, %p85
      %s88 = sadd.s32 %s87, 1
      %p91 = scmp.eq.s32.totalorder %s18, 1
      %p92 = scmp.ne.s32.totalorder %s87, %s89
      %p93 = scmp.eq.s32.totalorder %s18, 0
      %p94 = por %p92, %p93
      %p95 = scmp.ne.s32.totalorder %s87, %s89
      %p96 = scmp.eq.s32.totalorder %s23, 1
      %p97 = por %p95, %p96
      %p98 = scmp.ne.s32.totalorder %s89, %s90
      %p99 = scmp.eq.s32.totalorder %s23, 0
      %p100 = por %p98, %p99
      %p101 = scmp.ne.s32.totalorder %s89, %s90
      %p102 = scmp.eq.s32.totalorder %s24, 1
      %p103 = por %p101, %p102
      %p105 = scmp.ne.s32.totalorder %s90, %s104
      %p106 = scmp.eq.s32.totalorder %s24, 0
      %p107 = por %p105, %p106
      %s109 = sadd.s32 %s108, 1
      %p112 = scmp.eq.s32.totalorder %s18, 1
      %p113 = scmp.ne.s32.totalorder %s108, %s110
      %p114 = scmp.eq.s32.totalorder %s18, 0
      %p115 = por %p113, %p114
      %p116 = scmp.ne.s32.totalorder %s108, %s110
      %p117 = scmp.eq.s32.totalorder %s23, 1
      %p118 = por %p116, %p117
      %p119 = scmp.ne.s32.totalorder %s110, %s111
      %p120 = scmp.eq.s32.totalorder %s23, 0
      %p121 = por %p119, %p120
      %p122 = scmp.ne.s32.totalorder %s110, %s111
      %p123 = scmp.eq.s32.totalorder %s24, 1
      %p124 = por %p122, %p123
      %p126 = scmp.ne.s32.totalorder %s111, %s125
      %p127 = scmp.eq.s32.totalorder %s24, 0
      %p128 = por %p126, %p127
      %s130 = sadd.s32 %s129, 1
      %p133 = scmp.eq.s32.totalorder %s18, 1
      %p134 = scmp.ne.s32.totalorder %s129, %s131
      %p135 = scmp.eq.s32.totalorder %s18, 0
      %p136 = por %p134, %p135
      %p137 = scmp.ne.s32.totalorder %s129, %s131
      %p138 = scmp.eq.s32.totalorder %s23, 1
      %p139 = por %p137, %p138
      %p140 = scmp.ne.s32.totalorder %s131, %s132
      %p141 = scmp.eq.s32.totalorder %s23, 0
      %p142 = por %p140, %p141
      %p143 = scmp.ne.s32.totalorder %s131, %s132
      %p144 = scmp.eq.s32.totalorder %s24, 1
      %p145 = por %p143, %p144
      %p147 = scmp.ne.s32.totalorder %s132, %s146
      %p148 = scmp.eq.s32.totalorder %s24, 0
      %p149 = por %p147, %p148
      %s150 = ssub.s32 %s25, %s37
      %s151 = ssub.s32 %s26, %s33
      %s152 = sor.u32 %s150, %s151
      %p153 = scmp.eq.s32.totalorder %s152, 0
      %s155 = sadd.s32 %s154, 1
      %s156 = scalar_select %p153, %s154, %s155
      %p159 = pneg %p153
      %p160 = scmp.eq.s32.totalorder %s18, 1
      %p161 = por %p159, %p160
      %p162 = scmp.ne.s32.totalorder %s154, %s157
      %p163 = scmp.eq.s32.totalorder %s18, 0
      %p164 = por %p162, %p163
      %p165 = scmp.ne.s32.totalorder %s154, %s157
      %p166 = scmp.eq.s32.totalorder %s23, 1
      %p167 = por %p165, %p166
      %p168 = scmp.ne.s32.totalorder %s157, %s158
      %p169 = scmp.eq.s32.totalorder %s23, 0
      %p170 = por %p168, %p169
      %p171 = scmp.ne.s32.totalorder %s157, %s158
      %p172 = scmp.eq.s32.totalorder %s24, 1
      %p173 = por %p171, %p172
      %p175 = scmp.ne.s32.totalorder %s158, %s174
      %p176 = scmp.eq.s32.totalorder %s24, 0
      %p177 = por %p175, %p176
      %p178 = scmp.le.s32.totalorder 1, %s18
      %p179 = scmp.lt.s32.totalorder %s18, 3
      %p180 = pnand %p178, %p179
      %p181 = pneg %p180
      // Predicated region
      $region9: #{tpu_custom_call.1} parent=5 // pred_check
        _
      $region10: #{tpu_custom_call.1} parent=5 // pred_check_branch
        %183 = sbr.rel (%p180) target = $region12
      $region11: #{tpu_custom_call.1} parent=5 // pred_region
        %s184 = ssub.s32 %s18, 1
        // Predicated region
        $region13: #{tpu_custom_call.1} parent=11 // pred_check
          %p185 = pneg %p79
        $region14: #{tpu_custom_call.1} parent=11 // pred_check_branch
          %187 = sbr.rel (%p185) target = $region16
        $region15: #{tpu_custom_call.1} parent=11 // pred_region
          %s189 = ssub.s32 512, 512
          %190 = vsyncadd [#allocation6], %s189
          %s191 = sshll.u32 [#allocation5], 4
          %s192 = int_to_ptr.vmem [resolvable:$true] %s191
          %197 = dma.hbm_to_vmem [thread:$0]  %s1, 512, %s192, [#allocation6], 64, 64, 4
        $region16: #{tpu_custom_call.1} parent=11 // pred_fallthru
          _
        // Predicated region
        $region17: #{tpu_custom_call.1} parent=11 // pred_check
          %p198 = pneg %p100
        $region18: #{tpu_custom_call.1} parent=11 // pred_check_branch
          %200 = sbr.rel (%p198) target = $region20
        $region19: #{tpu_custom_call.1} parent=11 // pred_region
          _
        $region20: #{tpu_custom_call.1} parent=11 // pred_fallthru
          _
        // Predicated region
        $region21: #{tpu_custom_call.1} parent=11 // pred_check
          %p201 = pneg %p121
        $region22: #{tpu_custom_call.1} parent=11 // pred_check_branch
          %203 = sbr.rel (%p201) target = $region24
        $region23: #{tpu_custom_call.1} parent=11 // pred_region
          _
        $region24: #{tpu_custom_call.1} parent=11 // pred_fallthru
          _
        // Predicated region
        $region25: #{tpu_custom_call.1} parent=11 // pred_check
          %p204 = pneg %p142
        $region26: #{tpu_custom_call.1} parent=11 // pred_check_branch
          %206 = sbr.rel (%p204) target = $region28
        $region27: #{tpu_custom_call.1} parent=11 // pred_region
          _
        $region28: #{tpu_custom_call.1} parent=11 // pred_fallthru
          _
      $region12: #{tpu_custom_call.1} parent=5 // pred_fallthru
        _
      %p207 = scmp.lt.s32.totalorder %s18, 2
      // Predicated region
      $region29: #{tpu_custom_call.1} parent=5 // pred_check
        %p208 = pneg %p207
      $region30: #{tpu_custom_call.1} parent=5 // pred_check_branch
        %210 = sbr.rel (%p208) target = $region32
      $region31: #{tpu_custom_call.1} parent=5 // pred_region
        // Predicated region
        $region33: #{tpu_custom_call.1} parent=31 // pred_check
          %p211 = pneg %p52
        $region34: #{tpu_custom_call.1} parent=31 // pred_check_branch
          %213 = sbr.rel (%p211) target = $region36
        $region35: #{tpu_custom_call.1} parent=31 // pred_region
          %s214 = sand.u32 %s42, 1
          %s215 = scalar_lea.sflag [#allocation3], %s214
          %s216 = sand.u32 %s42, 1
          %s217 = smul.addr %s216, 8
          %s218 = scalar_lea.vmem [#allocation2], %s217
          %s219 = smul.u32 2, %s26
          %s221 = ssub.s32 128, 128
          %222 = vsyncadd %s215, %s221
          %s223 = smul.addr %s25, 2
          %s224 = sadd.s32 %s219, %s223
          %s225 = smul.addr %s224, 64
          %s226 = scalar_lea.hbm %s0, %s225
          %s227 = sshll.u32 %s218, 4
          %s228 = int_to_ptr.vmem [resolvable:$true] %s227
          %233 = dma.hbm_to_vmem [thread:$0]  %s226, 128, %s228, %s215, 64, 64, 4
        $region36: #{tpu_custom_call.1} parent=31 // pred_fallthru
          _
      $region32: #{tpu_custom_call.1} parent=5 // pred_fallthru
        _
      %p234 = scmp.le.s32.totalorder 1, %s18
      %p235 = scmp.lt.s32.totalorder %s18, 3
      %p236 = pnand %p234, %p235
      %p237 = pneg %p236
      // Predicated region
      $region37: #{tpu_custom_call.1} parent=5 // pred_check
        _
      $region38: #{tpu_custom_call.1} parent=5 // pred_check_branch
        %239 = sbr.rel (%p236) target = $region40
      $region39: #{tpu_custom_call.1} parent=5 // pred_region
        %s240 = ssub.s32 %s18, 1
        %s241 = sand.u32 %s45, 1
        %s242 = scalar_lea.sflag [#allocation3], %s241
        %s243 = sand.u32 %s45, 1
        %s244 = smul.addr %s243, 8
        %s245 = scalar_lea.vmem [#allocation2], %s244
        // Predicated region
        $region41: #{tpu_custom_call.1} parent=39 // pred_check
          %p246 = pneg %p58
        $region42: #{tpu_custom_call.1} parent=39 // pred_check_branch
          %248 = sbr.rel (%p246) target = $region44
        $region43: #{tpu_custom_call.1} parent=39 // pred_region
          %249 = dma.done %s242, 128
        $region44: #{tpu_custom_call.1} parent=39 // pred_fallthru
          _
        // Predicated region
        $region45: #{tpu_custom_call.1} parent=39 // pred_check
          %p250 = pneg %p79
        $region46: #{tpu_custom_call.1} parent=39 // pred_check_branch
          %252 = sbr.rel (%p250) target = $region48
        $region47: #{tpu_custom_call.1} parent=39 // pred_region
          %253 = dma.done [#allocation6], 512
        $region48: #{tpu_custom_call.1} parent=39 // pred_fallthru
          _
        %s254 = sand.u32 %s45, 1
        %s255 = scalar_lea.sflag [#allocation3], %s254
        %s256 = sand.u32 %s45, 1
        %s257 = smul.addr %s256, 8
        %s258 = scalar_lea.vmem [#allocation2], %s257
        %p259 = pneg %p58
        %p260 = pneg %p55
        %p261 = pneg %p79
        %p262 = pneg %p76
        %p263 = pneg %p100
        %p264 = pneg %p97
        %p265 = pneg %p121
        %p266 = pneg %p118
        %p267 = pneg %p142
        %p268 = pneg %p139
        %p269 = pneg %p170
        %p270 = pneg %p167
        %s271 = sand.u32 %s157, 1
        %s272 = scalar_lea.sflag [#allocation4], %s271
        %s273 = sand.u32 %s157, 1
        %s274 = smul.addr %s273, 16
        %s275 = scalar_lea.vmem [#allocation7], %s274
        %s276 = smul.u32 2, %s28
        %s277 = smul.u32 2, %s28
        %v279 = vld [vmem:[%s245] sm:$0xf]
        %v280 = vld [vmem:[%s245 + $0x4] sm:$0xf]
        %v281 = vld [vmem:[#allocation5] sm:$0xf]
        %v282 = vld [vmem:[#allocation5 + $0x4] sm:$0xf]
        %v283 = vld [vmem:[#allocation5 + $0x8] sm:$0xf]
        %v284 = vld [vmem:[#allocation5 + $0xc] sm:$0xf]
        %v285 = vld [vmem:[#allocation5 + $0x10] sm:$0xf]
        %v286 = vld [vmem:[#allocation5 + $0x14] sm:$0xf]
        %v287 = vld [vmem:[#allocation5 + $0x18] sm:$0xf]
        %v288 = vld [vmem:[#allocation5 + $0x1c] sm:$0xf]
        %v289 = vld [vmem:[%s2] sm:$0x1]
        %v291 = vlaneseq
        %v292 = vshrl.u32 %v291, 7
        %v293 = vsub.s32 0, %v292
        %v294 = vrot.slane %v289, %v293
        %v298 = vunpack.c.l.b16 %v279
        %v299 = vunpack.c.l.b16 %v280
        %v300 = vpack.c.b16 %v299, %v298
        %v309 = vunpack.c.l.b16 %v281
        %v310 = vunpack.c.l.b16 %v282
        %v311 = vunpack.c.l.b16 %v283
        %v312 = vunpack.c.l.b16 %v284
        %v313 = vunpack.c.l.b16 %v285
        %v314 = vunpack.c.l.b16 %v286
        %v315 = vunpack.c.l.b16 %v287
        %v316 = vunpack.c.l.b16 %v288
        %v317 = vpack.c.b16 %v310, %v309
        %v318 = vpack.c.b16 %v312, %v311
        %v319 = vpack.c.b16 %v314, %v313
        %v320 = vpack.c.b16 %v316, %v315
        %vm325 = vcmask 523264
        %v327 = vsel %vm325, %v300, 0
        %329 = vmatprep.subr.bf16.mxu0 0
        %330 = vmatpush1.bf16.msra.mxu0 %v317
        %331 = vmatprep.subr.bf16.mxu0 0
        %332 = vmatpush1.bf16.msra.mxu0 %v318
        %333 = vmatprep.subr.bf16.mxu0 0
        %334 = vmatpush1.bf16.msra.mxu0 %v319
        %335 = vmatprep.subr.bf16.mxu0 0
        %336 = vmatpush1.bf16.msra.mxu0 %v320
        %337 = vmatprep.subr.bf16.mxu0 0
        %338 = vmatpush1.bf16.msra.mxu0 0
        %339 = vmatprep.subr.bf16.mxu0 0
        %340 = vmatpush1.bf16.msra.mxu0 0
        %341 = vmatprep.subr.bf16.mxu0 0
        %342 = vmatpush1.bf16.msra.mxu0 0
        %343 = vmatprep.subr.bf16.mxu0 0
        %344 = vmatpush1.bf16.msra.mxu0 0
        %345 = vmatprep.subr.bf16.mxu0 0
        %346 = vmatpush1.bf16.msra.mxu0 0
        %347 = vmatprep.subr.bf16.mxu0 0
        %348 = vmatpush1.bf16.msra.mxu0 0
        %349 = vmatprep.subr.bf16.mxu0 0
        %350 = vmatpush1.bf16.msra.mxu0 0
        %351 = vmatprep.subr.bf16.mxu0 0
        %352 = vmatpush1.bf16.msra.mxu0 0
        %353 = vmatprep.subr.bf16.mxu0 0
        %354 = vmatpush1.bf16.msra.mxu0 0
        %355 = vmatprep.subr.bf16.mxu0 0
        %356 = vmatpush1.bf16.msra.mxu0 0
        %357 = vmatprep.subr.bf16.mxu0 0
        %358 = vmatpush1.bf16.msra.mxu0 0
        %359 = vmatprep.subr.bf16.mxu0 0
        %360 = vmatpush1.bf16.msra.mxu0 0
        %361 = vmatprep.mubr.bf16.mxu0 0
        %362 = vmatmul.mubr.bf16.gmra.mrb[0].mxu0 %v327
        %v363 = vpop.f32.mrb[0].mxu0
        %v364 = vadd.f32 %v294, %v363
        %v365 = vpop.f32.mrb[0].mxu0
        %v366 = vpop.f32.mrb[0].mxu0
        %v367 = vadd.f32 %v294, %v366
        %v368 = vpop.f32.mrb[0].mxu0
        %369 = vdwg.mxu0
        %370 = vadd.xlane.f32.xlu0 %v364
        %v371 = vpop.xlane.xlu0 %370
        %372 = vadd.xlane.f32.xlu0 %v367
        %v373 = vpop.xlane.xlu0 %372
        %v374 = vmul.f32 %v371, 0.03125
        %v375 = vmul.f32 %v373, 0.03125
        %v376 = vmul.f32 %v364, %v364
        %v377 = vmul.f32 %v367, %v367
        %378 = vadd.xlane.f32.xlu0 %v376
        %v379 = vpop.xlane.xlu0 %378
        %380 = vadd.xlane.f32.xlu0 %v377
        %v381 = vpop.xlane.xlu0 %380
        %v382 = vmul.f32 %v379, 0.03125
        %v383 = vmul.f32 %v381, 0.03125
        %v384 = vmul.f32 %v374, %v374
        %v385 = vmul.f32 %v375, %v375
        %v386 = vsub.f32 %v382, %v384
        %v387 = vsub.f32 %v383, %v385
        %v388 = vadd.f32 %v386, 1e-05
        %v389 = vadd.f32 %v387, 1e-05
        %v390 = vrsqrt.pop %v388
        %v391 = vrsqrt.pop %v389
        %v392 = vsub.f32 %v364, %v374
        %v393 = vsub.f32 %v367, %v375
        %v394 = vmul.f32 %v392, %v390
        %v395 = vmul.f32 %v393, %v391
        %v396 = vld [vmem:[%s3] sm:$0x1]
        %v398 = vlaneseq
        %v399 = vshrl.u32 %v398, 7
        %v400 = vsub.s32 0, %v399
        %v401 = vrot.slane %v396, %v400
        %v403 = vmul.f32 %v394, %v401
        %v404 = vmul.f32 %v395, %v401
        %v405 = vld [vmem:[%s4] sm:$0x1]
        %v407 = vlaneseq
        %v408 = vshrl.u32 %v407, 7
        %v409 = vsub.s32 0, %v408
        %v410 = vrot.slane %v405, %v409
        %v412 = vadd.f32 %v403, %v410
        %v413 = vadd.f32 %v404, %v410
        %414 = vst [vmem:[%s275] sm:$0xff] %v412
        %415 = vst [vmem:[%s275 + $0x8] sm:$0xff] %v413
        %s416 = sand.u32 %s157, 1
        %s417 = scalar_lea.sflag [#allocation4], %s416
        %s418 = sand.u32 %s157, 1
        %s419 = smul.addr %s418, 16
        %s420 = scalar_lea.vmem [#allocation7], %s419
        // Predicated region
        $region49: #{tpu_custom_call.1} parent=39 // pred_check
          %p421 = pneg %p167
        $region50: #{tpu_custom_call.1} parent=39 // pred_check_branch
          %423 = sbr.rel (%p421) target = $region52
        $region51: #{tpu_custom_call.1} parent=39 // pred_region
          %s424 = smul.u32 2, %s28
          %s426 = ssub.s32 256, 256
          %427 = vsyncadd %s417, %s426
          %s428 = smul.addr %s27, 2
          %s429 = sadd.s32 %s424, %s428
          %s430 = smul.addr %s429, 128
          %s431 = scalar_lea.hbm %s5, %s430
          %s432 = sshll.u32 %s420, 4
          %s433 = int_to_ptr.vmem [resolvable:$true] %s432
          %438 = dma.vmem_to_hbm [thread:$0]  %s433, 256, %s431, %s417, 128, 128, 8
        $region52: #{tpu_custom_call.1} parent=39 // pred_fallthru
          _
      $region40: #{tpu_custom_call.1} parent=5 // pred_fallthru
        _
      %p439 = scmp.le.s32.totalorder 2, %s18
      // Predicated region
      $region53: #{tpu_custom_call.1} parent=5 // pred_check
        %p440 = pneg %p439
      $region54: #{tpu_custom_call.1} parent=5 // pred_check_branch
        %442 = sbr.rel (%p440) target = $region56
      $region55: #{tpu_custom_call.1} parent=5 // pred_region
        %s443 = ssub.s32 %s18, 2
        // Predicated region
        $region57: #{tpu_custom_call.1} parent=55 // pred_check
          %p444 = pneg %p173
        $region58: #{tpu_custom_call.1} parent=55 // pred_check_branch
          %446 = sbr.rel (%p444) target = $region60
        $region59: #{tpu_custom_call.1} parent=55 // pred_region
          %s447 = sand.u32 %s158, 1
          %s448 = scalar_lea.sflag [#allocation4], %s447
          %s449 = sand.u32 %s158, 1
          %s450 = smul.addr %s449, 16
          %s451 = scalar_lea.vmem [#allocation7], %s450
          %452 = dma.done %s448, 256
        $region60: #{tpu_custom_call.1} parent=55 // pred_fallthru
          _
      $region56: #{tpu_custom_call.1} parent=5 // pred_fallthru
        _
    $region6: #{tpu_custom_call.1} parent=1 // loop_footer
      %s22 = sadd.s32 1, %s18
    $region7: #{tpu_custom_call.1} parent=1 // loop_footer_branch
      %17 = sbr.rel target = $region3
    $region8: #{tpu_custom_call.1} parent=1 // loop_exit
      _
    %453 = vsyncpa [#allocation3], 1
    %s454 = scalar_lea.sflag [#allocation3], 1
    %455 = vsyncpa %s454, 1
    %456 = vsyncpa [#allocation6], 1
    %457 = vsyncpa [#allocation4], 1
    %s458 = scalar_lea.sflag [#allocation4], 1
    %459 = vsyncpa %s458, 1

</llo_original>
